<compile_context>
chip_gen: v6e
topology: v6e:2x2x1
jax: 0.10.0
libtpu: 0.0.40
codegen_flags: <defaults>
</compile_context>

<pallas_src>
import functools

import jax
import jax.numpy as jnp
from jax import lax
from jax.experimental import pallas as pl
from jax.experimental.pallas import tpu as pltpu


HALO = 2  # one halo column per stacked k=3 conv (block1 + block2)


def _resnet_block_kernel(x_ref, ss_ref, w1_ref, w2_ref, vec_ref, o_ref, *,
                         dim_out, tn, has_res, eps):
    f32 = jnp.float32
    j = pl.program_id(1)
    n_j = pl.num_programs(1)

    xw = x_ref[...]                       # (dim, tn + 2*HALO) in matmul dtype
    l1 = tn + 2                           # width of block1 output window

    # packed per-channel params: [b1, g1*sqrt(C), b2, g2*sqrt(C), b_res, 0,0,0]
    vec = vec_ref[...]
    b1, g1s = vec[:, 0:1], vec[:, 1:2]
    b2, g2s = vec[:, 2:3], vec[:, 3:4]
    bres = vec[:, 4:5]

    ss = ss_ref[...]                      # (dim_out, 2) = [scale + 1, shift]
    scale1, shift = ss[:, 0:1], ss[:, 1:2]

    def stack3(v):
        # (C, L) -> (3C, L-2): rows = [v[n-1]; v[n]; v[n+1]] for the k=3 conv,
        # matching the [tap0 | tap1 | tap2] packing of the weights.
        L = v.shape[1]
        return jnp.concatenate([v[:, 0:L - 2], v[:, 1:L - 1], v[:, 2:L]], axis=0)

    def rms_norm(v, gscale):
        # F.normalize(v, dim=channel) * g * sqrt(C); gscale = g*sqrt(C).
        nsq = jnp.sum(v * v, axis=0, keepdims=True)
        inv = lax.rsqrt(jnp.maximum(nsq, eps * eps))
        return v * inv * gscale

    # ---- block1 conv (k=3) + fused residual 1x1: ONE MXU matmul ----
    y1 = jnp.dot(w1_ref[...], stack3(xw), preferred_element_type=f32)  # (M1, l1)
    if has_res:
        h = y1[0:dim_out, :] + b1
        res = y1[dim_out:2 * dim_out, :] + bres                        # (dim_out, l1)
        res = res[:, 1:1 + tn]                                         # output columns
    else:
        h = y1 + b1
        res = xw[:, HALO:HALO + tn].astype(f32)                        # identity residual

    h = rms_norm(h, g1s)
    h = h * scale1 + shift
    h = h * jax.nn.sigmoid(h)             # SiLU
    # TODO(synk): nn.Dropout omitted (identity at inference / p=0 default).

    # conv2 zero-padding: block1 output at global columns -1 / N must be zero.
    # Only the first / last tile contains such a column inside its halo window.
    lane = lax.broadcasted_iota(jnp.int32, (1, l1), 1)
    pad_cols = jnp.logical_or(
        jnp.logical_and(j == 0, lane == 0),
        jnp.logical_and(j == n_j - 1, lane == l1 - 1))
    h = jnp.where(pad_cols, 0.0, h)

    # ---- block2 conv (k=3): ONE MXU matmul ----
    h = jnp.dot(w2_ref[...], stack3(h.astype(w2_ref.dtype)),
                preferred_element_type=f32) + b2                        # (dim_out, tn)
    h = rms_norm(h, g2s)
    h = h * jax.nn.sigmoid(h)

    o_ref[...] = (h + res).astype(o_ref.dtype)


def _pick_tile_n(n, max_tile):
    """Largest multiple-of-128 tile <= max_tile that divides n, else whole n."""
    if n <= max_tile:
        return n
    tn = (max_tile // 128) * 128
    while tn >= 128:
        if n % tn == 0:
            return tn
        tn -= 128
    return n


def resnet_block(x, time_emb, w1, b1, g1, w2, b2, g2, w_t=None, b_t=None,
                 w_res=None, b_res=None, *, max_tile_n=512,
                 matmul_dtype=jnp.float32, eps=1e-12):
    """x: (B, dim, N); time_emb: (B, time_emb_dim) or None.

    Weights in PyTorch layout: w1 (dim_out, dim, 3), w2 (dim_out, dim_out, 3),
    w_t (2*dim_out, tdim), w_res (dim_out, dim, 1) or None (identity residual,
    requires dim == dim_out).  g1/g2/b* are (dim_out,).
    Set matmul_dtype=jnp.bfloat16 on v6e/v7x for MXU throughput if the
    accuracy budget allows (accumulation stays f32).
    """
    B, dim, N = x.shape
    dim_out = w1.shape[0]
    has_res = w_res is not None
    if not has_res:
        assert dim == dim_out, "identity residual requires dim == dim_out"

    tn = _pick_tile_n(N, max_tile_n)
    nt = N // tn
    W = tn + 2 * HALO
    f32 = jnp.float32
    hi = lax.Precision.HIGHEST

    # ---- hoisted time-embedding MLP (one GEMM for all batches, plain XLA) ----
    if time_emb is not None:
        t = time_emb.astype(f32)
        t = t * jax.nn.sigmoid(t)                       # SiLU
        tproj = jnp.dot(t, w_t.T.astype(f32), precision=hi) + b_t.astype(f32)
        scale = tproj[:, :dim_out]
        shift = tproj[:, dim_out:]
    else:
        scale = jnp.zeros((B, dim_out), f32)
        shift = jnp.zeros((B, dim_out), f32)
    ss = jnp.stack([scale + 1.0, shift], axis=-1)       # (B, dim_out, 2)

    # ---- tap-stacked conv weights (one matmul per conv); res 1x1 fused as
    #      extra output rows of the block1 matmul ----
    w1k = jnp.concatenate([w1[:, :, 0], w1[:, :, 1], w1[:, :, 2]], axis=1)
    w2k = jnp.concatenate([w2[:, :, 0], w2[:, :, 1], w2[:, :, 2]], axis=1)
    if has_res:
        z = jnp.zeros((dim_out, dim), w1.dtype)
        res_rows = jnp.concatenate([z, w_res.reshape(dim_out, dim), z], axis=1)
        w1s = jnp.concatenate([w1k, res_rows], axis=0)  # (2*dim_out, 3*dim)
        bres = b_res.astype(f32)
    else:
        w1s = w1k                                       # (dim_out, 3*dim)
        bres = jnp.zeros((dim_out,), f32)
    w1s = w1s.astype(matmul_dtype)
    w2s = w2k.astype(matmul_dtype)
    m1 = w1s.shape[0]

    # ---- packed per-channel vectors: one small DMA instead of five ----
    csqrt = float(dim_out) ** 0.5
    zero = jnp.zeros((dim_out,), f32)
    vec = jnp.stack([b1.astype(f32), g1.astype(f32) * csqrt,
                     b2.astype(f32), g2.astype(f32) * csqrt,
                     bres, zero, zero, zero], axis=1)   # (dim_out, 8)

    # ---- halo'd x tiles, zero-padded at the sequence ends ----
    xp = jnp.pad(x.astype(matmul_dtype), ((0, 0), (0, 0), (HALO, HALO)))
    x_t = jnp.stack([xp[:, :, j * tn: j * tn + W] for j in range(nt)],
                    axis=1)                             # (B, nt, dim, W)

    kernel = functools.partial(_resnet_block_kernel, dim_out=dim_out, tn=tn,
                               has_res=has_res, eps=eps)

    isz = jnp.dtype(matmul_dtype).itemsize
    block_bytes = (dim * W * isz + dim_out * 2 * 4 + w1s.size * isz
                   + w2s.size * isz + dim_out * 8 * 4 + dim_out * tn * 4)
    scratch_bytes = 4 * W * (3 * dim + 3 * dim_out + 8 * dim_out)
    vmem_limit = int(min(64 * 1024 * 1024,
                         max(8 * 1024 * 1024,
                             4 * block_bytes + 2 * scratch_bytes)))

    flops = B * nt * (2 * m1 * 3 * dim * (tn + 2)
                      + 2 * dim_out * 3 * dim_out * tn
                      + 14 * dim_out * tn)
    transc = B * nt * (2 * dim_out * tn + 2 * tn)
    bytes_acc = (x_t.size * isz + B * dim_out * N * 4
                 + B * nt * (w1s.size + w2s.size) * isz
                 + B * nt * dim_out * 10 * 4)

    return pl.pallas_call(
        kernel,
        out_shape=jax.ShapeDtypeStruct((B, dim_out, N), x.dtype),
        grid_spec=pltpu.PrefetchScalarGridSpec(
            num_scalar_prefetch=0,
            grid=(B, nt),
            in_specs=[
                pl.BlockSpec((None, None, dim, W), lambda b, j: (b, j, 0, 0)),  # x tiles
                pl.BlockSpec((None, dim_out, 2), lambda b, j: (b, 0, 0)),       # scale/shift
                pl.BlockSpec((m1, 3 * dim), lambda b, j: (0, 0)),               # w1 (+res)
                pl.BlockSpec((dim_out, 3 * dim_out), lambda b, j: (0, 0)),      # w2
                pl.BlockSpec((dim_out, 8), lambda b, j: (0, 0)),                # packed vecs
            ],
            out_specs=pl.BlockSpec((None, dim_out, tn), lambda b, j: (b, 0, j)),
        ),
        compiler_params=pltpu.CompilerParams(
            dimension_semantics=("parallel", "parallel"),
            vmem_limit_bytes=vmem_limit),
        cost_estimate=pl.CostEstimate(flops=int(flops),
                                      transcendentals=int(transc),
                                      bytes_accessed=int(bytes_acc)),
    )(x_t, ss, w1s, w2s, vec)


def reference_resnet_block(x, time_emb, w1, b1, g1, w2, b2, g2, w_t, b_t,
                           w_res, b_res, eps=1e-12):
    """Pure-JAX reference mirroring the PyTorch forward exactly."""
    B, dim, N = x.shape
    dim_out = w1.shape[0]
    hi = lax.Precision.HIGHEST

    if time_emb is not None:
        t = time_emb * jax.nn.sigmoid(time_emb)
        ssf = jnp.einsum('ot,bt->bo', w_t, t, precision=hi) + b_t[None, :]
        scale, shift = jnp.split(ssf, 2, axis=1)
        scale = scale[:, :, None]
        shift = shift[:, :, None]
    else:
        scale = jnp.zeros((B, dim_out, 1), x.dtype)
        shift = jnp.zeros((B, dim_out, 1), x.dtype)

    def conv1d3(v, w, b):
        vp = jnp.pad(v, ((0, 0), (0, 0), (1, 1)))
        y = (jnp.einsum('oc,bcn->bon', w[:, :, 0], vp[:, :, 0:N], precision=hi)
             + jnp.einsum('oc,bcn->bon', w[:, :, 1], vp[:, :, 1:N + 1], precision=hi)
             + jnp.einsum('oc,bcn->bon', w[:, :, 2], vp[:, :, 2:N + 2], precision=hi))
        return y + b[None, :, None]

    def rmsnorm(v, g):
        nrm = jnp.sqrt(jnp.sum(v * v, axis=1, keepdims=True))
        return v / jnp.maximum(nrm, eps) * g[None, :, None] * (v.shape[1] ** 0.5)

    h = conv1d3(x, w1, b1)
    h = rmsnorm(h, g1)
    h = h * (scale + 1.0) + shift
    h = h * jax.nn.sigmoid(h)

    h = conv1d3(h, w2, b2)
    h = rmsnorm(h, g2)
    h = h * jax.nn.sigmoid(h)

    if w_res is not None:
        res = jnp.einsum('oc,bcn->bon', w_res[:, :, 0], x, precision=hi) \
            + b_res[None, :, None]
    else:
        res = x
    return h + res


if __name__ == "__main__":
    key = jax.random.PRNGKey(0)
    ks = jax.random.split(key, 16)

    # Case 1: dim != dim_out (residual 1x1 conv exercised), time embedding,
    # N tiled into 3 tiles of 128 (first / interior / last tile paths).
    B, dim, dim_out, N, tdim = 2, 8, 16, 384, 32

    x = jax.random.normal(ks[0], (B, dim, N), dtype=jnp.float32)
    time_emb = jax.random.normal(ks[1], (B, tdim), dtype=jnp.float32)
    w1 = 0.05 * jax.random.normal(ks[2], (dim_out, dim, 3), dtype=jnp.float32)
    b1 = 0.01 * jax.random.normal(ks[3], (dim_out,), dtype=jnp.float32)
    g1 = 1.0 + 0.1 * jax.random.normal(ks[4], (dim_out,), dtype=jnp.float32)
    w2 = 0.05 * jax.random.normal(ks[5], (dim_out, dim_out, 3), dtype=jnp.float32)
    b2 = 0.01 * jax.random.normal(ks[6], (dim_out,), dtype=jnp.float32)
    g2 = 1.0 + 0.1 * jax.random.normal(ks[7], (dim_out,), dtype=jnp.float32)
    w_t = 0.05 * jax.random.normal(ks[8], (2 * dim_out, tdim), dtype=jnp.float32)
    b_t = 0.01 * jax.random.normal(ks[9], (2 * dim_out,), dtype=jnp.float32)
    w_res = 0.05 * jax.random.normal(ks[10], (dim_out, dim, 1), dtype=jnp.float32)
    b_res = 0.01 * jax.random.normal(ks[11], (dim_out,), dtype=jnp.float32)

    out = resnet_block(x, time_emb, w1, b1, g1, w2, b2, g2, w_t, b_t,
                       w_res, b_res, max_tile_n=128)
    out = jax.block_until_ready(out)
    ref = reference_resnet_block(x, time_emb, w1, b1, g1, w2, b2, g2, w_t, b_t,
                                 w_res, b_res)
    ref = jax.block_until_ready(ref)
    assert out.shape == (B, dim_out, N)
    err1 = float(jnp.max(jnp.abs(out - ref)))
    assert err1 < 2e-3, f"case1 max abs err = {err1}"

    # Case 2: dim == dim_out -> identity residual (statically specialized path).
    dim2, N2 = 16, 256
    x2 = jax.random.normal(ks[12], (B, dim2, N2), dtype=jnp.float32)
    w1b = 0.05 * jax.random.normal(ks[13], (dim2, dim2, 3), dtype=jnp.float32)

    out2 = resnet_block(x2, time_emb, w1b, b1, g1, w2, b2, g2, w_t, b_t,
                        None, None, max_tile_n=128)
    out2 = jax.block_until_ready(out2)
    ref2 = reference_resnet_block(x2, time_emb, w1b, b1, g1, w2, b2, g2, w_t, b_t,
                                  None, None)
    ref2 = jax.block_until_ready(ref2)
    err2 = float(jnp.max(jnp.abs(out2 - ref2)))
    assert err2 < 2e-3, f"case2 max abs err = {err2}"

    print("KERNEL_OK")
</pallas_src>

<mosaic_0001>
module attributes {stable_mosaic.version = 11 : i64} {
  func.func @_resnet_block_kernel(%arg0: i32, %arg1: i32, %arg2: memref<1x1x8x132xf32, #tpu.memory_space<vmem>>, %arg3: memref<1x16x2xf32, #tpu.memory_space<vmem>>, %arg4: memref<32x24xf32, #tpu.memory_space<vmem>>, %arg5: memref<16x48xf32, #tpu.memory_space<vmem>>, %arg6: memref<16x8xf32, #tpu.memory_space<vmem>>, %arg7: memref<1x16x128xf32, #tpu.memory_space<vmem>>) attributes {dimension_semantics = [#tpu.dimension_semantics<parallel>, #tpu.dimension_semantics<parallel>], iteration_bounds = array<i64: 2, 3>, scalar_prefetch = 0 : i64, scratch_operands = 0 : i64, tpu.core_type = #tpu.core_type<tc>, window_params = [{transform_indices = @transform_0, window_bounds = array<i64: 1, 1, 8, 132>}, {transform_indices = @transform_1, window_bounds = array<i64: 1, 16, 2>}, {pipeline_mode = #tpu.pipeline_mode<synchronous>, transform_indices = @transform_2, window_bounds = array<i64: 32, 24>}, {pipeline_mode = #tpu.pipeline_mode<synchronous>, transform_indices = @transform_3, window_bounds = array<i64: 16, 48>}, {pipeline_mode = #tpu.pipeline_mode<synchronous>, transform_indices = @transform_4, window_bounds = array<i64: 16, 8>}, {transform_indices = @transform_5, window_bounds = array<i64: 1, 16, 128>}]} {
    %c0 = arith.constant 0 : index
    %c0_0 = arith.constant 0 : index
    %c0_1 = arith.constant 0 : index
    %c0_2 = arith.constant 0 : index
    %0 = vector.load %arg2[%c0, %c0_0, %c0_1, %c0_2] : memref<1x1x8x132xf32, #tpu.memory_space<vmem>>, vector<1x1x8x132xf32>
    %1 = vector.shape_cast %0 : vector<1x1x8x132xf32> to vector<8x132xf32>
    %c0_3 = arith.constant 0 : index
    %c0_4 = arith.constant 0 : index
    %2 = vector.load %arg6[%c0_3, %c0_4] : memref<16x8xf32, #tpu.memory_space<vmem>>, vector<16x8xf32>
    %3 = vector.extract_strided_slice %2 {offsets = [0, 0], sizes = [16, 1], strides = [1, 1]} : vector<16x8xf32> to vector<16x1xf32>
    %4 = vector.extract_strided_slice %2 {offsets = [0, 1], sizes = [16, 1], strides = [1, 1]} : vector<16x8xf32> to vector<16x1xf32>
    %5 = vector.extract_strided_slice %2 {offsets = [0, 2], sizes = [16, 1], strides = [1, 1]} : vector<16x8xf32> to vector<16x1xf32>
    %6 = vector.extract_strided_slice %2 {offsets = [0, 3], sizes = [16, 1], strides = [1, 1]} : vector<16x8xf32> to vector<16x1xf32>
    %7 = vector.extract_strided_slice %2 {offsets = [0, 4], sizes = [16, 1], strides = [1, 1]} : vector<16x8xf32> to vector<16x1xf32>
    %c0_5 = arith.constant 0 : index
    %c0_6 = arith.constant 0 : index
    %c0_7 = arith.constant 0 : index
    %8 = vector.load %arg3[%c0_5, %c0_6, %c0_7] : memref<1x16x2xf32, #tpu.memory_space<vmem>>, vector<1x16x2xf32>
    %9 = vector.shape_cast %8 : vector<1x16x2xf32> to vector<16x2xf32>
    %10 = vector.extract_strided_slice %9 {offsets = [0, 0], sizes = [16, 1], strides = [1, 1]} : vector<16x2xf32> to vector<16x1xf32>
    %11 = vector.extract_strided_slice %9 {offsets = [0, 1], sizes = [16, 1], strides = [1, 1]} : vector<16x2xf32> to vector<16x1xf32>
    %c0_8 = arith.constant 0 : index
    %c0_9 = arith.constant 0 : index
    %12 = vector.load %arg4[%c0_8, %c0_9] : memref<32x24xf32, #tpu.memory_space<vmem>>, vector<32x24xf32>
    %13 = vector.extract_strided_slice %1 {offsets = [0, 0], sizes = [8, 130], strides = [1, 1]} : vector<8x132xf32> to vector<8x130xf32>
    %14 = vector.extract_strided_slice %1 {offsets = [0, 1], sizes = [8, 130], strides = [1, 1]} : vector<8x132xf32> to vector<8x130xf32>
    %15 = vector.extract_strided_slice %1 {offsets = [0, 2], sizes = [8, 130], strides = [1, 1]} : vector<8x132xf32> to vector<8x130xf32>
    %16 = tpu.concatenate %13, %14, %15 in 0 : vector<8x130xf32>, vector<8x130xf32>, vector<8x130xf32> -> vector<24x130xf32>
    %cst = arith.constant dense<0.000000e+00> : vector<32x130xf32>
    %17 = tpu.matmul %12, %16, %cst {dimension_numbers = #tpu.dot_dimension_numbers<[1], [0], [0], [1], [0, 0, 1, 1], [], []>} : vector<32x24xf32>, vector<24x130xf32>, vector<32x130xf32> -> vector<32x130xf32>
    %18 = vector.extract_strided_slice %17 {offsets = [0, 0], sizes = [16, 130], strides = [1, 1]} : vector<32x130xf32> to vector<16x130xf32>
    %19 = vector.broadcast %3 : vector<16x1xf32> to vector<16x130xf32>
    %20 = arith.addf %18, %19 : vector<16x130xf32>
    %21 = vector.extract_strided_slice %17 {offsets = [16, 0], sizes = [16, 130], strides = [1, 1]} : vector<32x130xf32> to vector<16x130xf32>
    %22 = vector.broadcast %7 : vector<16x1xf32> to vector<16x130xf32>
    %23 = arith.addf %21, %22 : vector<16x130xf32>
    %24 = vector.extract_strided_slice %23 {offsets = [0, 1], sizes = [16, 128], strides = [1, 1]} : vector<16x130xf32> to vector<16x128xf32>
    %25 = arith.mulf %20, %20 : vector<16x130xf32>
    %cst_10 = arith.constant dense<0.000000e+00> : vector<130xf32>
    %26 = vector.multi_reduction <add>, %25, %cst_10 [0] : vector<16x130xf32> to vector<130xf32>
    %27 = vector.shape_cast %26 : vector<130xf32> to vector<1x130xf32>
    %cst_11 = arith.constant 1.000000e-24 : f32
    %28 = vector.broadcast %cst_11 : f32 to vector<1x130xf32>
    %29 = arith.maximumf %27, %28 : vector<1x130xf32>
    %30 = math.rsqrt %29 : vector<1x130xf32>
    %31 = vector.broadcast %30 : vector<1x130xf32> to vector<16x130xf32>
    %32 = arith.mulf %20, %31 : vector<16x130xf32>
    %33 = vector.broadcast %4 : vector<16x1xf32> to vector<16x130xf32>
    %34 = arith.mulf %32, %33 : vector<16x130xf32>
    %35 = vector.broadcast %10 : vector<16x1xf32> to vector<16x130xf32>
    %36 = arith.mulf %34, %35 : vector<16x130xf32>
    %37 = vector.broadcast %11 : vector<16x1xf32> to vector<16x130xf32>
    %38 = arith.addf %36, %37 : vector<16x130xf32>
    %39 = arith.negf %38 : vector<16x130xf32>
    %40 = math.exp %39 : vector<16x130xf32>
    %cst_12 = arith.constant 1.000000e+00 : f32
    %41 = vector.broadcast %cst_12 : f32 to vector<16x130xf32>
    %42 = arith.addf %41, %40 : vector<16x130xf32>
    %43 = arith.divf %41, %42 : vector<16x130xf32>
    %44 = arith.mulf %38, %43 : vector<16x130xf32>
    %45 = tpu.iota {dimensions = array<i32: 1>} : vector<1x130xi32>
    %c0_i32 = arith.constant 0 : i32
    %46 = arith.cmpi eq, %arg1, %c0_i32 : i32
    %c0_i32_13 = arith.constant 0 : i32
    %47 = vector.broadcast %c0_i32_13 : i32 to vector<1x130xi32>
    %48 = arith.cmpi eq, %45, %47 : vector<1x130xi32>
    %49 = vector.broadcast %46 : i1 to vector<1x130xi1>
    %50 = arith.andi %49, %48 : vector<1x130xi1>
    %c2_i32 = arith.constant 2 : i32
    %51 = arith.cmpi eq, %arg1, %c2_i32 : i32
    %c129_i32 = arith.constant 129 : i32
    %52 = vector.broadcast %c129_i32 : i32 to vector<1x130xi32>
    %53 = arith.cmpi eq, %45, %52 : vector<1x130xi32>
    %54 = vector.broadcast %51 : i1 to vector<1x130xi1>
    %55 = arith.andi %54, %53 : vector<1x130xi1>
    %56 = arith.ori %50, %55 : vector<1x130xi1>
    %cst_14 = arith.constant 0.000000e+00 : f32
    %57 = vector.shape_cast %56 : vector<1x130xi1> to vector<1x130xi1>
    %58 = vector.broadcast %57 : vector<1x130xi1> to vector<16x130xi1>
    %59 = vector.broadcast %cst_14 : f32 to vector<16x130xf32>
    %60 = arith.select %58, %59, %44 : vector<16x130xi1>, vector<16x130xf32>
    %c0_15 = arith.constant 0 : index
    %c0_16 = arith.constant 0 : index
    %61 = vector.load %arg5[%c0_15, %c0_16] : memref<16x48xf32, #tpu.memory_space<vmem>>, vector<16x48xf32>
    %62 = vector.extract_strided_slice %60 {offsets = [0, 0], sizes = [16, 128], strides = [1, 1]} : vector<16x130xf32> to vector<16x128xf32>
    %63 = vector.extract_strided_slice %60 {offsets = [0, 1], sizes = [16, 128], strides = [1, 1]} : vector<16x130xf32> to vector<16x128xf32>
    %64 = vector.extract_strided_slice %60 {offsets = [0, 2], sizes = [16, 128], strides = [1, 1]} : vector<16x130xf32> to vector<16x128xf32>
    %65 = tpu.concatenate %62, %63, %64 in 0 : vector<16x128xf32>, vector<16x128xf32>, vector<16x128xf32> -> vector<48x128xf32>
    %cst_17 = arith.constant dense<0.000000e+00> : vector<16x128xf32>
    %66 = tpu.matmul %61, %65, %cst_17 {dimension_numbers = #tpu.dot_dimension_numbers<[1], [0], [0], [1], [0, 0, 1, 1], [], []>} : vector<16x48xf32>, vector<48x128xf32>, vector<16x128xf32> -> vector<16x128xf32>
    %67 = vector.broadcast %5 : vector<16x1xf32> to vector<16x128xf32>
    %68 = arith.addf %66, %67 : vector<16x128xf32>
    %69 = arith.mulf %68, %68 : vector<16x128xf32>
    %cst_18 = arith.constant dense<0.000000e+00> : vector<128xf32>
    %70 = vector.multi_reduction <add>, %69, %cst_18 [0] : vector<16x128xf32> to vector<128xf32>
    %71 = vector.shape_cast %70 : vector<128xf32> to vector<1x128xf32>
    %cst_19 = arith.constant 1.000000e-24 : f32
    %72 = vector.broadcast %cst_19 : f32 to vector<1x128xf32>
    %73 = arith.maximumf %71, %72 : vector<1x128xf32>
    %74 = math.rsqrt %73 : vector<1x128xf32>
    %75 = vector.broadcast %74 : vector<1x128xf32> to vector<16x128xf32>
    %76 = arith.mulf %68, %75 : vector<16x128xf32>
    %77 = vector.broadcast %6 : vector<16x1xf32> to vector<16x128xf32>
    %78 = arith.mulf %76, %77 : vector<16x128xf32>
    %79 = arith.negf %78 : vector<16x128xf32>
    %80 = math.exp %79 : vector<16x128xf32>
    %cst_20 = arith.constant 1.000000e+00 : f32
    %81 = vector.broadcast %cst_20 : f32 to vector<16x128xf32>
    %82 = arith.addf %81, %80 : vector<16x128xf32>
    %83 = arith.divf %81, %82 : vector<16x128xf32>
    %84 = arith.mulf %78, %83 : vector<16x128xf32>
    %85 = arith.addf %84, %24 : vector<16x128xf32>
    %c0_21 = arith.constant 0 : index
    %c0_22 = arith.constant 0 : index
    %c0_23 = arith.constant 0 : index
    %86 = vector.load %arg7[%c0_21, %c0_22, %c0_23] : memref<1x16x128xf32, #tpu.memory_space<vmem>>, vector<1x16x128xf32>
    %87 = vector.shape_cast %86 : vector<1x16x128xf32> to vector<16x128xf32>
    %88 = vector.shape_cast %85 : vector<16x128xf32> to vector<1x16x128xf32>
    tpu.vector_store %arg7[%c0_21, %c0_22, %c0_23], %88 {strides = array<i32>} : memref<1x16x128xf32, #tpu.memory_space<vmem>>, vector<1x16x128xf32>,
    return
  }
  func.func @transform_0(%arg0: i32, %arg1: i32) -> (i32, i32, i32, i32) {
    %c0_i32 = arith.constant 0 : i32
    %c0_i32_0 = arith.constant 0 : i32
    %c0_i32_1 = arith.constant 0 : i32
    return %arg0, %arg1, %c0_i32, %c0_i32_0 : i32, i32, i32, i32
  }
  func.func @transform_1(%arg0: i32, %arg1: i32) -> (i32, i32, i32) {
    %c0_i32 = arith.constant 0 : i32
    %c0_i32_0 = arith.constant 0 : i32
    %c0_i32_1 = arith.constant 0 : i32
    return %arg0, %c0_i32, %c0_i32_0 : i32, i32, i32
  }
  func.func @transform_2(%arg0: i32, %arg1: i32) -> (i32, i32) {
    %c0_i32 = arith.constant 0 : i32
    %c0_i32_0 = arith.constant 0 : i32
    %c0_i32_1 = arith.constant 0 : i32
    return %c0_i32, %c0_i32_0 : i32, i32
  }
  func.func @transform_3(%arg0: i32, %arg1: i32) -> (i32, i32) {
    %c0_i32 = arith.constant 0 : i32
    %c0_i32_0 = arith.constant 0 : i32
    %c0_i32_1 = arith.constant 0 : i32
    return %c0_i32, %c0_i32_0 : i32, i32
  }
  func.func @transform_4(%arg0: i32, %arg1: i32) -> (i32, i32) {
    %c0_i32 = arith.constant 0 : i32
    %c0_i32_0 = arith.constant 0 : i32
    %c0_i32_1 = arith.constant 0 : i32
    return %c0_i32, %c0_i32_0 : i32, i32
  }
  func.func @transform_5(%arg0: i32, %arg1: i32) -> (i32, i32, i32) {
    %c0_i32 = arith.constant 0 : i32
    %c0_i32_0 = arith.constant 0 : i32
    return %arg0, %c0_i32, %arg1 : i32, i32, i32
  }
}

</mosaic_0001>

<llo_original>
// kernel: tpu_custom_call.1
$region0: #{tpu_custom_call.1}
  #allocation0 [shape = 'u32[]', space=smem, size = 0x4, offset = 0x4, fixed_abs, tag = 'smem constant byte address 0x4 - core index']
  #allocation1 [shape = 'u32[144,128]{1,0:T(1,128)}', space=vmem, size = 0x12000, scoped, tag = 'internal scratch']
  %s0 = inlined_call_operand.vmem [shape: f32[2,3,8,132], index: 0, kind: input, shape index: {}]
  %s1 = inlined_call_operand.vmem [shape: f32[2,16,2], index: 1, kind: input, shape index: {}]
  %s2 = inlined_call_operand.vmem [shape: f32[32,24], index: 2, kind: input, shape index: {}]
  %s3 = inlined_call_operand.vmem [shape: f32[16,48], index: 3, kind: input, shape index: {}]
  %s4 = inlined_call_operand.vmem [shape: f32[16,8], index: 4, kind: input, shape index: {}]
  %s5 = inlined_call_operand.hbm [shape: f32[2,16,384], index: 5, kind: output, shape index: {}]
  %s6 = sld [smem:[#allocation0]]
  $region53: #{tpu_custom_call.1} parent=0
    _
  %s8 = ssub.s32 1, %s6
  %s9 = scalar_select 0, %s8, %s6
  $region1: #{tpu_custom_call.1} parent=0
    #allocation2 [shape = 'u8[16384]{0}', space=vmem, size = 0x4000, scoped, tag = 'output window, operand 0']
    #allocation3 [shape = 's32[2]{0}', space=sflag, size = 0x8, scoped, tag = 'scoped memory for tpu_custom_call.1']
    %10 = vsyncpa [#allocation3], 0
    %s11 = scalar_lea.sflag [#allocation3], 1
    %12 = vsyncpa %s11, 0
    loop: start=0, step=1, limit=8
    $region2: #{tpu_custom_call.1} parent=1 // loop_pre_header
      _
    $region3: #{tpu_custom_call.1} parent=1 // loop_header
      %s14 = sphi 0, %s18
      %p15 = scmp.ge.s32.totalorder %s14, 8
      %s21 = sphi 0, %s33
      %s22 = sphi 0, %s29
      %s23 = sphi 0, %s21
      %s24 = sphi 0, %s22
      %s25 = sphi 0, %s23
      %s26 = sphi 0, %s24
      %s38 = sphi 0, %s40
      %s41 = sphi 0, %s38
      %s42 = sphi 0, %s41
      %s58 = sphi 0, %s42
      %s64 = sphi 0, %s66
      %s67 = sphi 0, %s64
      %s68 = sphi 0, %s67
      %s84 = sphi 0, %s68
      %s88 = sphi 0, %s88
      %s90 = sphi 0, %s88
      %s91 = sphi 0, %s90
      %s105 = sphi 0, %s91
      %s109 = sphi 0, %s109
      %s111 = sphi 0, %s109
      %s112 = sphi 0, %s111
      %s126 = sphi 0, %s112
      %s130 = sphi 0, %s130
      %s132 = sphi 0, %s130
      %s133 = sphi 0, %s132
      %s147 = sphi 0, %s133
      %s155 = sphi 0, %s157
      %s158 = sphi 0, %s155
      %s159 = sphi 0, %s158
      %s175 = sphi 0, %s159
    $region4: #{tpu_custom_call.1} parent=1 // loop_header_branch
      %17 = sbr.rel (%p15) target = $region8
    $region5: #{tpu_custom_call.1} parent=1 // loop_body
      %s19 = ssub.s32 %s14, 1
      %s20 = ssub.s32 %s14, 2
      %s27 = sadd.s32 1, %s22
      %p28 = scmp.ge.s32.totalorder %s27, 3
      %s29 = scalar_select %p28, 0, %s27
      %s30 = sadd.s32 1, %s21
      %s31 = scalar_select %p28, %s30, %s21
      %p32 = scmp.ge.s32.totalorder %s31, 2
      %s33 = scalar_select %p32, 0, %s31
      %s34 = ssub.s32 %s21, %s33
      %s35 = ssub.s32 %s22, %s29
      %s36 = sor.u32 %s34, %s35
      %p37 = scmp.eq.s32.totalorder %s36, 0
      %s39 = sadd.s32 %s38, 1
      %s40 = scalar_select %p37, %s38, %s39
      %p43 = pneg %p37
      %p44 = scmp.eq.s32.totalorder %s14, 5
      %p45 = por %p43, %p44
      %p46 = scmp.ne.s32.totalorder %s38, %s41
      %p47 = scmp.eq.s32.totalorder %s14, 0
      %p48 = por %p46, %p47
      %p49 = scmp.ne.s32.totalorder %s38, %s41
      %p50 = scmp.eq.s32.totalorder %s19, 5
      %p51 = por %p49, %p50
      %p52 = scmp.ne.s32.totalorder %s41, %s42
      %p53 = scmp.eq.s32.totalorder %s19, 0
      %p54 = por %p52, %p53
      %p55 = scmp.ne.s32.totalorder %s41, %s42
      %p56 = scmp.eq.s32.totalorder %s20, 5
      %p57 = por %p55, %p56
      %p59 = scmp.ne.s32.totalorder %s42, %s58
      %p60 = scmp.eq.s32.totalorder %s20, 0
      %p61 = por %p59, %p60
      %s62 = ssub.s32 %s21, %s33
      %p63 = scmp.eq.s32.totalorder %s62, 0
      %s65 = sadd.s32 %s64, 1
      %s66 = scalar_select %p63, %s64, %s65
      %p69 = pneg %p63
      %p70 = scmp.eq.s32.totalorder %s14, 5
      %p71 = por %p69, %p70
      %p72 = scmp.ne.s32.totalorder %s64, %s67
      %p73 = scmp.eq.s32.totalorder %s14, 0
      %p74 = por %p72, %p73
      %p75 = scmp.ne.s32.totalorder %s64, %s67
      %p76 = scmp.eq.s32.totalorder %s19, 5
      %p77 = por %p75, %p76
      %p78 = scmp.ne.s32.totalorder %s67, %s68
      %p79 = scmp.eq.s32.totalorder %s19, 0
      %p80 = por %p78, %p79
      %p81 = scmp.ne.s32.totalorder %s67, %s68
      %p82 = scmp.eq.s32.totalorder %s20, 5
      %p83 = por %p81, %p82
      %p85 = scmp.ne.s32.totalorder %s68, %s84
      %p86 = scmp.eq.s32.totalorder %s20, 0
      %p87 = por %p85, %p86
      %s89 = sadd.s32 %s88, 1
      %p92 = scmp.eq.s32.totalorder %s14, 5
      %p93 = scmp.ne.s32.totalorder %s88, %s90
      %p94 = scmp.eq.s32.totalorder %s14, 0
      %p95 = por %p93, %p94
      %p96 = scmp.ne.s32.totalorder %s88, %s90
      %p97 = scmp.eq.s32.totalorder %s19, 5
      %p98 = por %p96, %p97
      %p99 = scmp.ne.s32.totalorder %s90, %s91
      %p100 = scmp.eq.s32.totalorder %s19, 0
      %p101 = por %p99, %p100
      %p102 = scmp.ne.s32.totalorder %s90, %s91
      %p103 = scmp.eq.s32.totalorder %s20, 5
      %p104 = por %p102, %p103
      %p106 = scmp.ne.s32.totalorder %s91, %s105
      %p107 = scmp.eq.s32.totalorder %s20, 0
      %p108 = por %p106, %p107
      %s110 = sadd.s32 %s109, 1
      %p113 = scmp.eq.s32.totalorder %s14, 5
      %p114 = scmp.ne.s32.totalorder %s109, %s111
      %p115 = scmp.eq.s32.totalorder %s14, 0
      %p116 = por %p114, %p115
      %p117 = scmp.ne.s32.totalorder %s109, %s111
      %p118 = scmp.eq.s32.totalorder %s19, 5
      %p119 = por %p117, %p118
      %p120 = scmp.ne.s32.totalorder %s111, %s112
      %p121 = scmp.eq.s32.totalorder %s19, 0
      %p122 = por %p120, %p121
      %p123 = scmp.ne.s32.totalorder %s111, %s112
      %p124 = scmp.eq.s32.totalorder %s20, 5
      %p125 = por %p123, %p124
      %p127 = scmp.ne.s32.totalorder %s112, %s126
      %p128 = scmp.eq.s32.totalorder %s20, 0
      %p129 = por %p127, %p128
      %s131 = sadd.s32 %s130, 1
      %p134 = scmp.eq.s32.totalorder %s14, 5
      %p135 = scmp.ne.s32.totalorder %s130, %s132
      %p136 = scmp.eq.s32.totalorder %s14, 0
      %p137 = por %p135, %p136
      %p138 = scmp.ne.s32.totalorder %s130, %s132
      %p139 = scmp.eq.s32.totalorder %s19, 5
      %p140 = por %p138, %p139
      %p141 = scmp.ne.s32.totalorder %s132, %s133
      %p142 = scmp.eq.s32.totalorder %s19, 0
      %p143 = por %p141, %p142
      %p144 = scmp.ne.s32.totalorder %s132, %s133
      %p145 = scmp.eq.s32.totalorder %s20, 5
      %p146 = por %p144, %p145
      %p148 = scmp.ne.s32.totalorder %s133, %s147
      %p149 = scmp.eq.s32.totalorder %s20, 0
      %p150 = por %p148, %p149
      %s151 = ssub.s32 %s21, %s33
      %s152 = ssub.s32 %s22, %s29
      %s153 = sor.u32 %s151, %s152
      %p154 = scmp.eq.s32.totalorder %s153, 0
      %s156 = sadd.s32 %s155, 1
      %s157 = scalar_select %p154, %s155, %s156
      %p160 = pneg %p154
      %p161 = scmp.eq.s32.totalorder %s14, 5
      %p162 = por %p160, %p161
      %p163 = scmp.ne.s32.totalorder %s155, %s158
      %p164 = scmp.eq.s32.totalorder %s14, 0
      %p165 = por %p163, %p164
      %p166 = scmp.ne.s32.totalorder %s155, %s158
      %p167 = scmp.eq.s32.totalorder %s19, 5
      %p168 = por %p166, %p167
      %p169 = scmp.ne.s32.totalorder %s158, %s159
      %p170 = scmp.eq.s32.totalorder %s19, 0
      %p171 = por %p169, %p170
      %p172 = scmp.ne.s32.totalorder %s158, %s159
      %p173 = scmp.eq.s32.totalorder %s20, 5
      %p174 = por %p172, %p173
      %p176 = scmp.ne.s32.totalorder %s159, %s175
      %p177 = scmp.eq.s32.totalorder %s20, 0
      %p178 = por %p176, %p177
      %p179 = scmp.le.s32.totalorder 1, %s14
      %p180 = scmp.lt.s32.totalorder %s14, 7
      %p181 = pnand %p179, %p180
      %p182 = pneg %p181
      // Predicated region
      $region9: #{tpu_custom_call.1} parent=5 // pred_check
        _
      $region10: #{tpu_custom_call.1} parent=5 // pred_check_branch
        %184 = sbr.rel (%p181) target = $region12
      $region11: #{tpu_custom_call.1} parent=5 // pred_region
        %s185 = ssub.s32 %s14, 1
        // Predicated region
        $region13: #{tpu_custom_call.1} parent=11 // pred_check
          %p186 = pneg %p101
        $region14: #{tpu_custom_call.1} parent=11 // pred_check_branch
          %188 = sbr.rel (%p186) target = $region16
        $region15: #{tpu_custom_call.1} parent=11 // pred_region
          _
        $region16: #{tpu_custom_call.1} parent=11 // pred_fallthru
          _
        // Predicated region
        $region17: #{tpu_custom_call.1} parent=11 // pred_check
          %p189 = pneg %p122
        $region18: #{tpu_custom_call.1} parent=11 // pred_check_branch
          %191 = sbr.rel (%p189) target = $region20
        $region19: #{tpu_custom_call.1} parent=11 // pred_region
          _
        $region20: #{tpu_custom_call.1} parent=11 // pred_fallthru
          _
        // Predicated region
        $region21: #{tpu_custom_call.1} parent=11 // pred_check
          %p192 = pneg %p143
        $region22: #{tpu_custom_call.1} parent=11 // pred_check_branch
          %194 = sbr.rel (%p192) target = $region24
        $region23: #{tpu_custom_call.1} parent=11 // pred_region
          _
        $region24: #{tpu_custom_call.1} parent=11 // pred_fallthru
          _
      $region12: #{tpu_custom_call.1} parent=5 // pred_fallthru
        _
      %p195 = scmp.lt.s32.totalorder %s14, 6
      // Predicated region
      $region25: #{tpu_custom_call.1} parent=5 // pred_check
        %p196 = pneg %p195
      $region26: #{tpu_custom_call.1} parent=5 // pred_check_branch
        %198 = sbr.rel (%p196) target = $region28
      $region27: #{tpu_custom_call.1} parent=5 // pred_region
        // Predicated region
        $region29: #{tpu_custom_call.1} parent=27 // pred_check
          %p199 = pneg %p48
        $region30: #{tpu_custom_call.1} parent=27 // pred_check_branch
          %201 = sbr.rel (%p199) target = $region32
        $region31: #{tpu_custom_call.1} parent=27 // pred_region
          %p202 = scmp.lt.s32.totalorder %s21, 1
          %s203 = scalar_select %p202, %s21, 1
          %p204 = scmp.lt.s32.totalorder %s22, 2
          %s205 = scalar_select %p204, %s22, 2
          %s206 = smul.addr %s205, 2
          %s207 = smul.addr %s203, 6
          %s208 = sadd.s32 %s206, %s207
          %s209 = smul.addr %s208, 8
          %s210 = scalar_lea.vmem %s0, %s209
        $region32: #{tpu_custom_call.1} parent=27 // pred_fallthru
          _
        // Predicated region
        $region33: #{tpu_custom_call.1} parent=27 // pred_check
          %p211 = pneg %p74
        $region34: #{tpu_custom_call.1} parent=27 // pred_check_branch
          %213 = sbr.rel (%p211) target = $region36
        $region35: #{tpu_custom_call.1} parent=27 // pred_region
          %p214 = scmp.lt.s32.totalorder %s21, 1
          %s215 = scalar_select %p214, %s21, 1
          %s216 = smul.addr %s215, 2
          %s217 = smul.addr %s216, 8
          %s218 = scalar_lea.vmem %s1, %s217
        $region36: #{tpu_custom_call.1} parent=27 // pred_fallthru
          _
      $region28: #{tpu_custom_call.1} parent=5 // pred_fallthru
        _
      %p219 = scmp.le.s32.totalorder 1, %s14
      %p220 = scmp.lt.s32.totalorder %s14, 7
      %p221 = pnand %p219, %p220
      %p222 = pneg %p221
      // Predicated region
      $region37: #{tpu_custom_call.1} parent=5 // pred_check
        _
      $region38: #{tpu_custom_call.1} parent=5 // pred_check_branch
        %224 = sbr.rel (%p221) target = $region40
      $region39: #{tpu_custom_call.1} parent=5 // pred_region
        %s225 = ssub.s32 %s14, 1
        %p226 = scmp.lt.s32.totalorder %s23, 1
        %s227 = scalar_select %p226, %s23, 1
        %p228 = scmp.lt.s32.totalorder %s24, 2
        %s229 = scalar_select %p228, %s24, 2
        %s230 = smul.addr %s229, 2
        %s231 = smul.addr %s227, 6
        %s232 = sadd.s32 %s230, %s231
        %s233 = smul.addr %s232, 8
        %s234 = scalar_lea.vmem %s0, %s233
        %p235 = pneg %p54
        %p236 = pneg %p51
        %p237 = scmp.lt.s32.totalorder %s23, 1
        %s238 = scalar_select %p237, %s23, 1
        %s239 = smul.addr %s238, 2
        %s240 = smul.addr %s239, 8
        %s241 = scalar_lea.vmem %s1, %s240
        %p242 = pneg %p80
        %p243 = pneg %p77
        %p244 = pneg %p101
        %p245 = pneg %p98
        %p246 = pneg %p122
        %p247 = pneg %p119
        %p248 = pneg %p143
        %p249 = pneg %p140
        %p250 = pneg %p171
        %p251 = pneg %p168
        %s252 = sand.u32 %s158, 1
        %s253 = scalar_lea.sflag [#allocation3], %s252
        %s254 = sand.u32 %s158, 1
        %s255 = smul.addr %s254, 16
        %s256 = scalar_lea.vmem [#allocation2], %s255
        %p257 = scmp.lt.s32.totalorder %s23, 1
        %s258 = scalar_select %p257, %s23, 1
        %p259 = scmp.lt.s32.totalorder %s24, 2
        %s260 = scalar_select %p259, %s24, 2
        %s261 = smul.addr %s260, 2
        %s262 = smul.addr %s258, 6
        %s263 = sadd.s32 %s261, %s262
        %s264 = smul.addr %s263, 8
        %s265 = scalar_lea.vmem %s0, %s264
        %p266 = scmp.lt.s32.totalorder %s23, 1
        %s267 = scalar_select %p266, %s23, 1
        %s268 = smul.addr %s267, 2
        %s269 = smul.addr %s268, 8
        %s270 = scalar_lea.vmem %s1, %s269
        %v271 = vld [vmem:[%s265] sm:$0xff]
        %v272 = vld [vmem:[%s265 + $0x8] sm:$0xff]
        %v273 = vld [vmem:[%s4] sm:$0xff]
        %v274 = vld [vmem:[%s4 + $0x8] sm:$0xff]
        %v275 = vld [vmem:[%s270] sm:$0xff]
        %v276 = vld [vmem:[%s270 + $0x8] sm:$0xff]
        %v277 = vld [vmem:[%s2] sm:$0xff]
        %v278 = vld [vmem:[%s2 + $0x8] sm:$0xff]
        %v279 = vld [vmem:[%s2 + $0x10] sm:$0xff]
        %v280 = vld [vmem:[%s2 + $0x18] sm:$0xff]
        %283 = vrot.lane.b32.xlu0 %v271, 127
        %v284 = vpop.permute.xlu0 %283
        %285 = vrot.lane.b32.xlu0 %v272, 127
        %v286 = vpop.permute.xlu0 %285
        %vm287 = vcmask 1039360
        %v288 = vsel %vm287, %v284, %v286
        %291 = vrot.lane.b32.xlu0 %v271, 126
        %v292 = vpop.permute.xlu0 %291
        %293 = vrot.lane.b32.xlu0 %v272, 126
        %v294 = vpop.permute.xlu0 %293
        %vm295 = vcmask 1031168
        %v296 = vsel %vm295, %v292, %v294
        %vm299 = vcmask 195584
        %v301 = vsel %vm299, %v277, 0
        %v304 = vsel %vm299, %v278, 0
        %v307 = vsel %vm299, %v279, 0
        %v310 = vsel %vm299, %v280, 0
        %312 = vmatprep.subr.mxu0 0.0
        %313 = vmatpush1.msra.mxu0 0.0
        %314 = vmatprep.subr.mxu0 0.0
        %315 = vmatpush1.msra.mxu0 0.0
        %316 = vmatprep.subr.mxu0 0.0
        %317 = vmatpush1.msra.mxu0 0.0
        %318 = vmatprep.subr.mxu0 0.0
        %319 = vmatpush1.msra.mxu0 0.0
        %320 = vmatprep.subr.mxu0 0.0
        %321 = vmatpush1.msra.mxu0 0.0
        %322 = vmatprep.subr.mxu0 0.0
        %323 = vmatpush1.msra.mxu0 0.0
        %324 = vmatprep.subr.mxu0 0.0
        %325 = vmatpush1.msra.mxu0 0.0
        %326 = vmatprep.subr.mxu0 0.0
        %327 = vmatpush1.msra.mxu0 0.0
        %328 = vmatprep.subr.mxu0 0.0
        %329 = vmatpush1.msra.mxu0 0.0
        %330 = vmatprep.subr.mxu0 0.0
        %331 = vmatpush1.msra.mxu0 0.0
        %332 = vmatprep.subr.mxu0 0.0
        %333 = vmatpush1.msra.mxu0 0.0
        %334 = vmatprep.subr.mxu0 0.0
        %335 = vmatpush1.msra.mxu0 0.0
        %336 = vmatprep.subr.mxu0 0.0
        %337 = vmatpush1.msra.mxu0 0.0
        %338 = vmatprep.subr.mxu0 %v294
        %339 = vmatpush1.msra.mxu0 %v296
        %340 = vmatprep.subr.mxu0 %v286
        %341 = vmatpush1.msra.mxu0 %v288
        %342 = vmatprep.subr.mxu0 %v272
        %343 = vmatpush1.msra.mxu0 %v271
        %344 = vmatprep.subr.mxu0 0.0
        %345 = vmatpush2.msra.mxu0 0.0
        %346 = vmatprep.subr.mxu0 0.0
        %347 = vmatpush2.msra.mxu0 0.0
        %348 = vmatprep.subr.mxu0 0.0
        %349 = vmatpush2.msra.mxu0 0.0
        %350 = vmatprep.subr.mxu0 0.0
        %351 = vmatpush2.msra.mxu0 0.0
        %352 = vmatprep.subr.mxu0 0.0
        %353 = vmatpush2.msra.mxu0 0.0
        %354 = vmatprep.subr.mxu0 0.0
        %355 = vmatpush2.msra.mxu0 0.0
        %356 = vmatprep.subr.mxu0 0.0
        %357 = vmatpush2.msra.mxu0 0.0
        %358 = vmatprep.subr.mxu0 0.0
        %359 = vmatpush2.msra.mxu0 0.0
        %360 = vmatprep.subr.mxu0 0.0
        %361 = vmatpush2.msra.mxu0 0.0
        %362 = vmatprep.subr.mxu0 0.0
        %363 = vmatpush2.msra.mxu0 0.0
        %364 = vmatprep.subr.mxu0 0.0
        %365 = vmatpush2.msra.mxu0 0.0
        %366 = vmatprep.subr.mxu0 0.0
        %367 = vmatpush2.msra.mxu0 0.0
        %368 = vmatprep.subr.mxu0 0.0
        %369 = vmatpush2.msra.mxu0 0.0
        %370 = vmatprep.subr.mxu0 0.0
        %371 = vmatpush2.msra.mxu0 0.0
        %372 = vmatprep.subr.mxu0 0.0
        %373 = vmatpush2.msra.mxu0 0.0
        %374 = vmatprep.subr.mxu0 0.0
        %375 = vmatpush2.msra.mxu0 0.0
        %376 = vmatprep.mubr.f32.mxu0 0.0
        %377 = vmatmul.mubr.f32.gmra.mxu0 %v301
        %v378 = vpop.f32.mrf.mxu0
        %v379 = vadd.f32 0.0, %v378
        %v380 = vpop.f32.mrf.mxu0
        %v381 = vadd.f32 0.0, %v380
        %382 = vmatprep.mubr.f32.mxu0 0.0
        %383 = vmatmul.mubr.f32.gmra.mxu0 %v304
        %v384 = vpop.f32.mrf.mxu0
        %v385 = vadd.f32 0.0, %v384
        %v386 = vpop.f32.mrf.mxu0
        %v387 = vadd.f32 0.0, %v386
        %388 = vmatprep.mubr.f32.mxu0 0.0
        %389 = vmatmul.mubr.f32.gmra.mxu0 %v307
        %v390 = vpop.f32.mrf.mxu0
        %v391 = vadd.f32 0.0, %v390
        %v392 = vpop.f32.mrf.mxu0
        %v393 = vadd.f32 0.0, %v392
        %394 = vmatprep.mubr.f32.mxu0 0.0
        %395 = vmatmul.mubr.f32.gmra.mxu0 %v310
        %v396 = vpop.f32.mrf.mxu0
        %v397 = vadd.f32 0.0, %v396
        %v398 = vpop.f32.mrf.mxu0
        %v399 = vadd.f32 0.0, %v398
        %400 = vdwg.mxu0
        %402 = vset.pattern.permute.xlu0 0
        %403 = vperm.xlu0 %402, %v273
        %v404 = vpop.permute.xlu0 %403
        %407 = vset.pattern.permute.xlu0 0
        %408 = vperm.xlu0 %407, %v274
        %v409 = vpop.permute.xlu0 %408
        %v411 = vadd.f32 %v379, %v404
        %v412 = vadd.f32 %v381, %v404
        %v413 = vadd.f32 %v385, %v409
        %v414 = vadd.f32 %v387, %v409
        %415 = vset.pattern.permute.xlu0 4
        %416 = vperm.xlu0 %415, %v273
        %v417 = vpop.permute.xlu0 %416
        %419 = vset.pattern.permute.xlu0 4
        %420 = vperm.xlu0 %419, %v274
        %v421 = vpop.permute.xlu0 %420
        %v423 = vadd.f32 %v391, %v417
        %v424 = vadd.f32 %v393, %v417
        %v425 = vadd.f32 %v397, %v421
        %v426 = vadd.f32 %v399, %v421
        %v427 = vmul.f32 %v411, %v411
        %v428 = vmul.f32 %v412, %v412
        %v429 = vmul.f32 %v413, %v413
        %v430 = vmul.f32 %v414, %v414
        %v431 = vadd.f32 %v427, %v429
        %v432 = vrot.slane %v431, 4
        %v433 = vadd.f32 %v431, %v432
        %v434 = vrot.slane %v433, 2
        %v435 = vadd.f32 %v433, %v434
        %v436 = vrot.slane %v435, 1
        %v437 = vadd.f32 %v435, %v436
        %vm438 = vcmask 15360
        %v439 = vsel %vm438, %v428, 0.0
        %v440 = vsel %vm438, %v430, 0.0
        %v441 = vadd.f32 %v439, %v440
        %v442 = vrot.slane %v441, 4
        %v443 = vadd.f32 %v441, %v442
        %v444 = vrot.slane %v443, 2
        %v445 = vadd.f32 %v443, %v444
        %v446 = vrot.slane %v445, 1
        %v447 = vadd.f32 %v445, %v446
        %v448 = vmax.f32 %v437, 1e-24
        %v449 = vmax.f32 %v447, 1e-24
        %v450 = vrsqrt.pop %v448
        %v451 = vrsqrt.pop %v449
        %v452 = vmul.f32 %v411, %v450
        %v453 = vmul.f32 %v412, %v451
        %v454 = vmul.f32 %v413, %v450
        %v455 = vmul.f32 %v414, %v451
        %456 = vset.pattern.permute.xlu0 1
        %457 = vperm.xlu0 %456, %v273
        %v458 = vpop.permute.xlu0 %457
        %460 = vset.pattern.permute.xlu0 1
        %461 = vperm.xlu0 %460, %v274
        %v462 = vpop.permute.xlu0 %461
        %v464 = vmul.f32 %v452, %v458
        %v465 = vmul.f32 %v453, %v458
        %v466 = vmul.f32 %v454, %v462
        %v467 = vmul.f32 %v455, %v462
        %469 = vset.pattern.permute.xlu0 0
        %470 = vperm.xlu0 %469, %v275
        %v471 = vpop.permute.xlu0 %470
        %474 = vset.pattern.permute.xlu0 0
        %475 = vperm.xlu0 %474, %v276
        %v476 = vpop.permute.xlu0 %475
        %v478 = vmul.f32 %v464, %v471
        %v479 = vmul.f32 %v465, %v471
        %v480 = vmul.f32 %v466, %v476
        %v481 = vmul.f32 %v467, %v476
        %482 = vset.pattern.permute.xlu0 1
        %483 = vperm.xlu0 %482, %v275
        %v484 = vpop.permute.xlu0 %483
        %486 = vset.pattern.permute.xlu0 1
        %487 = vperm.xlu0 %486, %v276
        %v488 = vpop.permute.xlu0 %487
        %v490 = vadd.f32 %v478, %v484
        %v491 = vadd.f32 %v479, %v484
        %v492 = vadd.f32 %v480, %v488
        %v493 = vadd.f32 %v481, %v488
        %v494 = vxor.u32 %v490, 2147483648
        %v495 = vxor.u32 %v491, 2147483648
        %v496 = vxor.u32 %v492, 2147483648
        %v497 = vxor.u32 %v493, 2147483648
        %v498 = vmul.f32 %v494, 1.442695
        %v499 = vpow.pop %v498
        %v500 = vmul.f32 %v495, 1.442695
        %v501 = vpow.pop %v500
        %v502 = vmul.f32 %v496, 1.442695
        %v503 = vpow.pop %v502
        %v504 = vmul.f32 %v497, 1.442695
        %v505 = vpow.pop %v504
        %v506 = vadd.f32 %v499, 1.0
        %v507 = vadd.f32 %v501, 1.0
        %v508 = vadd.f32 %v503, 1.0
        %v509 = vadd.f32 %v505, 1.0
        %v510 = vrcp.pop %v506
        %v511 = vmul.f32 1.0, %v510
        %v512 = vrcp.pop %v507
        %v513 = vmul.f32 1.0, %v512
        %v514 = vrcp.pop %v508
        %v515 = vmul.f32 1.0, %v514
        %v516 = vrcp.pop %v509
        %v517 = vmul.f32 1.0, %v516
        %v518 = vmul.f32 %v490, %v511
        %v519 = vmul.f32 %v491, %v513
        %v520 = vmul.f32 %v492, %v515
        %v521 = vmul.f32 %v493, %v517
        %v522 = vlaneseq
        %v523 = vand.u32 %v522, 127
        %v524 = vadd.s32 %v523, 128
        %p525 = scmp.eq.s32.totalorder %s24, 0
        %vm526 = vcmp.eq.s32.totalorder %v523, 0
        %vm527 = vcmp.eq.s32.totalorder %v524, 0
        %s528 = scalar_select %p525, 1, 0
        %v529 = vstv %s528
        %vm530 = vcmp.eq.s32.totalorder %v529, 1
        %vm531 = vmand %vm530, %vm526
        %vm532 = vmand %vm530, %vm527
        %p533 = scmp.eq.s32.totalorder %s24, 2
        %vm534 = vcmp.eq.s32.totalorder %v523, 129
        %vm535 = vcmp.eq.s32.totalorder %v524, 129
        %s536 = scalar_select %p533, 1, 0
        %v537 = vstv %s536
        %vm538 = vcmp.eq.s32.totalorder %v537, 1
        %vm539 = vmand %vm538, %vm534
        %vm540 = vmand %vm538, %vm535
        %vm541 = vmor %vm531, %vm539
        %vm542 = vmor %vm532, %vm540
        %v543 = vsel %vm541, 1, 0
        %v544 = vsel %vm542, 1, 0
        %vm545 = vcmp.eq.s32.totalorder %v543, 1
        %vm546 = vcmp.eq.s32.totalorder %v544, 1
        %v547 = vsel %vm545, 0.0, %v518
        %v548 = vsel %vm546, 0.0, %v519
        %v549 = vsel %vm545, 0.0, %v520
        %v550 = vsel %vm546, 0.0, %v521
        %v551 = vld [vmem:[%s3] sm:$0xff]
        %v552 = vld [vmem:[%s3 + $0x8] sm:$0xff]
        %557 = vrot.lane.b32.xlu0 %v547, 127
        %v558 = vpop.permute.xlu0 %557
        %559 = vrot.lane.b32.xlu0 %v548, 127
        %v560 = vpop.permute.xlu0 %559
        %561 = vrot.lane.b32.xlu0 %v549, 127
        %v562 = vpop.permute.xlu0 %561
        %563 = vrot.lane.b32.xlu0 %v550, 127
        %v564 = vpop.permute.xlu0 %563
        %v565 = vsel %vm287, %v558, %v560
        %v566 = vsel %vm287, %v562, %v564
        %569 = vrot.lane.b32.xlu0 %v547, 126
        %v570 = vpop.permute.xlu0 %569
        %571 = vrot.lane.b32.xlu0 %v548, 126
        %v572 = vpop.permute.xlu0 %571
        %573 = vrot.lane.b32.xlu0 %v549, 126
        %v574 = vpop.permute.xlu0 %573
        %575 = vrot.lane.b32.xlu0 %v550, 126
        %v576 = vpop.permute.xlu0 %575
        %v577 = vsel %vm295, %v570, %v572
        %v578 = vsel %vm295, %v574, %v576
        %581 = vset.pattern.permute.xlu0 2
        %582 = vperm.xlu0 %581, %v273
        %v583 = vpop.permute.xlu0 %582
        %585 = vset.pattern.permute.xlu0 2
        %586 = vperm.xlu0 %585, %v274
        %v587 = vpop.permute.xlu0 %586
        %vm589 = vcmask 392192
        %v591 = vsel %vm589, %v551, 0
        %v594 = vsel %vm589, %v552, 0
        %596 = vmatprep.subr.mxu0 0.0
        %597 = vmatpush1.msra.mxu0 0.0
        %598 = vmatprep.subr.mxu0 0.0
        %599 = vmatpush1.msra.mxu0 0.0
        %600 = vmatprep.subr.mxu0 0.0
        %601 = vmatpush1.msra.mxu0 0.0
        %602 = vmatprep.subr.mxu0 0.0
        %603 = vmatpush1.msra.mxu0 0.0
        %604 = vmatprep.subr.mxu0 0.0
        %605 = vmatpush1.msra.mxu0 0.0
        %606 = vmatprep.subr.mxu0 0.0
        %607 = vmatpush1.msra.mxu0 0.0
        %608 = vmatprep.subr.mxu0 0.0
        %609 = vmatpush1.msra.mxu0 0.0
        %610 = vmatprep.subr.mxu0 0.0
        %611 = vmatpush1.msra.mxu0 0.0
        %612 = vmatprep.subr.mxu0 0.0
        %613 = vmatpush1.msra.mxu0 0.0
        %614 = vmatprep.subr.mxu0 0.0
        %615 = vmatpush1.msra.mxu0 0.0
        %616 = vmatprep.subr.mxu0 0.0
        %617 = vmatpush1.msra.mxu0 %v578
        %618 = vmatprep.subr.mxu0 0.0
        %619 = vmatpush1.msra.mxu0 %v577
        %620 = vmatprep.subr.mxu0 0.0
        %621 = vmatpush1.msra.mxu0 %v566
        %622 = vmatprep.subr.mxu0 0.0
        %623 = vmatpush1.msra.mxu0 %v565
        %624 = vmatprep.subr.mxu0 0.0
        %625 = vmatpush1.msra.mxu0 %v549
        %626 = vmatprep.subr.mxu0 0.0
        %627 = vmatpush1.msra.mxu0 %v547
        %628 = vmatprep.subr.mxu0 0.0
        %629 = vmatpush2.msra.mxu0 0.0
        %630 = vmatprep.subr.mxu0 0.0
        %631 = vmatpush2.msra.mxu0 0.0
        %632 = vmatprep.subr.mxu0 0.0
        %633 = vmatpush2.msra.mxu0 0.0
        %634 = vmatprep.subr.mxu0 0.0
        %635 = vmatpush2.msra.mxu0 0.0
        %636 = vmatprep.subr.mxu0 0.0
        %637 = vmatpush2.msra.mxu0 0.0
        %638 = vmatprep.subr.mxu0 0.0
        %639 = vmatpush2.msra.mxu0 0.0
        %640 = vmatprep.subr.mxu0 0.0
        %641 = vmatpush2.msra.mxu0 0.0
        %642 = vmatprep.subr.mxu0 0.0
        %643 = vmatpush2.msra.mxu0 0.0
        %644 = vmatprep.subr.mxu0 0.0
        %645 = vmatpush2.msra.mxu0 0.0
        %646 = vmatprep.subr.mxu0 0.0
        %647 = vmatpush2.msra.mxu0 0.0
        %648 = vmatprep.subr.mxu0 0.0
        %649 = vmatpush2.msra.mxu0 0.0
        %650 = vmatprep.subr.mxu0 0.0
        %651 = vmatpush2.msra.mxu0 0.0
        %652 = vmatprep.subr.mxu0 0.0
        %653 = vmatpush2.msra.mxu0 0.0
        %654 = vmatprep.subr.mxu0 0.0
        %655 = vmatpush2.msra.mxu0 0.0
        %656 = vmatprep.subr.mxu0 0.0
        %657 = vmatpush2.msra.mxu0 0.0
        %658 = vmatprep.subr.mxu0 0.0
        %659 = vmatpush2.msra.mxu0 0.0
        %660 = vmatprep.mubr.f32.mxu0 0.0
        %661 = vmatmul.mubr.f32.gmra.mxu0 %v591
        %v662 = vpop.f32.mrf.mxu0
        %v663 = vadd.f32 %v583, %v662
        %v664 = vpop.f32.mrf.mxu0
        %665 = vmatprep.mubr.f32.mxu0 0.0
        %666 = vmatmul.mubr.f32.gmra.mxu0 %v594
        %v667 = vpop.f32.mrf.mxu0
        %v668 = vadd.f32 %v587, %v667
        %v669 = vpop.f32.mrf.mxu0
        %670 = vdwg.mxu0
        %v671 = vmul.f32 %v663, %v663
        %v672 = vmul.f32 %v668, %v668
        %v673 = vadd.f32 %v671, %v672
        %v674 = vrot.slane %v673, 4
        %v675 = vadd.f32 %v673, %v674
        %v676 = vrot.slane %v675, 2
        %v677 = vadd.f32 %v675, %v676
        %v678 = vrot.slane %v677, 1
        %v679 = vadd.f32 %v677, %v678
        %v680 = vmax.f32 %v679, 1e-24
        %v681 = vrsqrt.pop %v680
        %v682 = vmul.f32 %v663, %v681
        %v683 = vmul.f32 %v668, %v681
        %684 = vset.pattern.permute.xlu0 3
        %685 = vperm.xlu0 %684, %v273
        %v686 = vpop.permute.xlu0 %685
        %688 = vset.pattern.permute.xlu0 3
        %689 = vperm.xlu0 %688, %v274
        %v690 = vpop.permute.xlu0 %689
        %v692 = vmul.f32 %v682, %v686
        %v693 = vmul.f32 %v683, %v690
        %v694 = vxor.u32 %v692, 2147483648
        %v695 = vxor.u32 %v693, 2147483648
        %v696 = vmul.f32 %v694, 1.442695
        %v697 = vpow.pop %v696
        %v698 = vmul.f32 %v695, 1.442695
        %v699 = vpow.pop %v698
        %v700 = vadd.f32 %v697, 1.0
        %v701 = vadd.f32 %v699, 1.0
        %v702 = vrcp.pop %v700
        %v703 = vmul.f32 1.0, %v702
        %v704 = vrcp.pop %v701
        %v705 = vmul.f32 1.0, %v704
        %v706 = vmul.f32 %v692, %v703
        %v707 = vmul.f32 %v693, %v705
        %712 = vrot.lane.b32.xlu0 %v423, 127
        %v713 = vpop.permute.xlu0 %712
        %714 = vrot.lane.b32.xlu0 %v424, 127
        %v715 = vpop.permute.xlu0 %714
        %716 = vrot.lane.b32.xlu0 %v425, 127
        %v717 = vpop.permute.xlu0 %716
        %718 = vrot.lane.b32.xlu0 %v426, 127
        %v719 = vpop.permute.xlu0 %718
        %v720 = vsel %vm287, %v713, %v715
        %v721 = vsel %vm287, %v717, %v719
        %v724 = vadd.f32 %v706, %v720
        %v725 = vadd.f32 %v707, %v721
        %726 = vst [vmem:[%s256] sm:$0xff] %v724
        %727 = vst [vmem:[%s256 + $0x8] sm:$0xff] %v725
        %s728 = sand.u32 %s158, 1
        %s729 = scalar_lea.sflag [#allocation3], %s728
        %s730 = sand.u32 %s158, 1
        %s731 = smul.addr %s730, 16
        %s732 = scalar_lea.vmem [#allocation2], %s731
        // Predicated region
        $region41: #{tpu_custom_call.1} parent=39 // pred_check
          %p733 = pneg %p168
        $region42: #{tpu_custom_call.1} parent=39 // pred_check_branch
          %735 = sbr.rel (%p733) target = $region44
        $region43: #{tpu_custom_call.1} parent=39 // pred_region
          %s737 = ssub.s32 256, 256
          %738 = vsyncadd %s729, %s737
          %s739 = smul.addr %s23, 6
          %s740 = sadd.s32 %s24, %s739
          %s741 = smul.addr %s740, 128
          %s742 = scalar_lea.hbm %s5, %s741
          %s743 = sshll.u32 %s732, 4
          %s744 = int_to_ptr.vmem [resolvable:$true] %s743
          %749 = dma.vmem_to_hbm [thread:$0]  %s744, 256, %s742, %s729, 128, 384, 8
        $region44: #{tpu_custom_call.1} parent=39 // pred_fallthru
          _
      $region40: #{tpu_custom_call.1} parent=5 // pred_fallthru
        _
      %p750 = scmp.le.s32.totalorder 2, %s14
      // Predicated region
      $region45: #{tpu_custom_call.1} parent=5 // pred_check
        %p751 = pneg %p750
      $region46: #{tpu_custom_call.1} parent=5 // pred_check_branch
        %753 = sbr.rel (%p751) target = $region48
      $region47: #{tpu_custom_call.1} parent=5 // pred_region
        %s754 = ssub.s32 %s14, 2
        // Predicated region
        $region49: #{tpu_custom_call.1} parent=47 // pred_check
          %p755 = pneg %p174
        $region50: #{tpu_custom_call.1} parent=47 // pred_check_branch
          %757 = sbr.rel (%p755) target = $region52
        $region51: #{tpu_custom_call.1} parent=47 // pred_region
          %s758 = sand.u32 %s159, 1
          %s759 = scalar_lea.sflag [#allocation3], %s758
          %s760 = sand.u32 %s159, 1
          %s761 = smul.addr %s760, 16
          %s762 = scalar_lea.vmem [#allocation2], %s761
          %763 = dma.done %s759, 256
        $region52: #{tpu_custom_call.1} parent=47 // pred_fallthru
          _
      $region48: #{tpu_custom_call.1} parent=5 // pred_fallthru
        _
    $region6: #{tpu_custom_call.1} parent=1 // loop_footer
      %s18 = sadd.s32 1, %s14
    $region7: #{tpu_custom_call.1} parent=1 // loop_footer_branch
      %13 = sbr.rel target = $region3
    $region8: #{tpu_custom_call.1} parent=1 // loop_exit
      _
    %764 = vsyncpa [#allocation3], 1
    %s765 = scalar_lea.sflag [#allocation3], 1
    %766 = vsyncpa %s765, 1

</llo_original>
